<compile_context>
chip_gen: v7x
topology: tpu7x:2x2x1
jax: 0.10.0
libtpu: 0.0.40
codegen_flags: <defaults>
</compile_context>

<pallas_src>
import functools

import jax
import jax.numpy as jnp
from jax import lax
from jax.experimental import pallas as pl
from jax.experimental.pallas import tpu as pltpu


# ----------------------------------------------------------------------------
# Fused kernel: whole stacked-attention forward for one batch element
# ----------------------------------------------------------------------------
def _stacked_attn_kernel(*refs, num_layers, latent_dim, scale):
    """refs = (x, [wqkv_i, bqkv_i] * num_layers, w_out, b_out, o)

    x     : (1, S, D_in)  VMEM block (one batch element per grid step)
    wqkv_i: (D_in_i, 3L)  VMEM (untiled, resident)   bqkv_i: (1, 3L)
    w_out : (L, D_out)    VMEM (untiled, resident)   b_out : (1, D_out)
    o     : (1, S, D_out) VMEM block
    """
    x_ref = refs[0]
    layer_refs = refs[1:1 + 2 * num_layers]
    w_out_ref = refs[1 + 2 * num_layers]
    b_out_ref = refs[2 + 2 * num_layers]
    o_ref = refs[3 + 2 * num_layers]

    L = latent_dim
    x = x_ref[0].astype(jnp.float32)                                   # (S, D_in)

    # Static Python loop → fully unrolled over layers (weights differ per layer).
    for i in range(num_layers):
        wqkv = layer_refs[2 * i][...]
        bqkv = layer_refs[2 * i + 1][...]

        # Single fused QKV projection: (S, D_in_i) @ (D_in_i, 3L) -> (S, 3L)
        qkv = jnp.dot(x, wqkv, preferred_element_type=jnp.float32) + bqkv
        q = qkv[:, 0 * L:1 * L]
        k = qkv[:, 1 * L:2 * L]
        v = qkv[:, 2 * L:3 * L]

        # scores[r, c] = sum_d q[r, d] * k[c, d]  (contract last axes; no k.T)
        scores = lax.dot_general(
            q, k,
            dimension_numbers=(((1,), (1,)), ((), ())),
            preferred_element_type=jnp.float32,
        ) * scale

        # softmax over keys (axis=-1 == torch dim=2)
        scores = scores - jnp.max(scores, axis=-1, keepdims=True)
        p = jnp.exp(scores)
        denom = jnp.sum(p, axis=-1, keepdims=True)
        attn = p * pl.reciprocal(denom, approx=True)

        # Context.  The layer's output projection Wo/bo has been folded into
        # the NEXT layer's wqkv/bqkv (or into w_out/b_out) wrapper-side.
        x = jnp.dot(attn, v, preferred_element_type=jnp.float32)       # (S, L)

    out = jnp.dot(x, w_out_ref[...], preferred_element_type=jnp.float32) + b_out_ref[...]
    o_ref[0] = out.astype(o_ref.dtype)


# ----------------------------------------------------------------------------
# Wrapper
# ----------------------------------------------------------------------------
def stacked_attention_forward(x, params):
    """x: (B, S, D_in) -> (B, S, D_out). Single fused pallas_call, grid over B."""
    B, S, D_in = x.shape
    num_layers = len(params["layers"])
    L = params["layers"][0]["wq"].shape[1]
    D_out = params["w_out"].shape[1]
    scale = 1.0 / (float(L) ** 0.5)

    # Build fused QKV weights and fold the previous layer's output projection
    # (Wo, bo) into them:  (ctx@Wo+bo)@Wqkv+bqkv == ctx@(Wo@Wqkv) + (bo@Wqkv+bqkv).
    args = [x]
    prev_wo, prev_bo = None, None
    for layer in params["layers"]:
        wqkv = jnp.concatenate([layer["wq"], layer["wk"], layer["wv"]], axis=1)
        bqkv = jnp.concatenate([layer["bq"], layer["bk"], layer["bv"]], axis=1)
        if prev_wo is not None:
            bqkv = prev_bo @ wqkv + bqkv     # use unfolded wqkv, then overwrite
            wqkv = prev_wo @ wqkv
        args += [wqkv, bqkv]
        prev_wo, prev_bo = layer["wo"], layer["bo"]
    w_out = prev_wo @ params["w_out"]
    b_out = prev_bo @ params["w_out"] + params["b_out"]
    args += [w_out, b_out]

    kernel = functools.partial(
        _stacked_attn_kernel,
        num_layers=num_layers, latent_dim=L, scale=scale,
    )

    vmem_full = pl.BlockSpec(memory_space=pltpu.MemorySpace.VMEM)
    in_specs = ([pl.BlockSpec((1, S, D_in), lambda b: (b, 0, 0))]
                + [vmem_full] * (len(args) - 1))
    out_specs = pl.BlockSpec((1, S, D_out), lambda b: (b, 0, 0))

    out = pl.pallas_call(
        kernel,
        out_shape=jax.ShapeDtypeStruct((B, S, D_out), jnp.float32),
        grid=(B,),
        in_specs=in_specs,
        out_specs=out_specs,
        compiler_params=pltpu.CompilerParams(dimension_semantics=("parallel",)),
    )(*args)
    return out


# ----------------------------------------------------------------------------
# Deterministic parameter init (PyTorch nn.Linear-like uniform init)
# ----------------------------------------------------------------------------
def _init_linear(key, fan_in, fan_out):
    kw, kb = jax.random.split(key)
    bound = 1.0 / (fan_in ** 0.5)
    # stored as (in, out) so kernels compute x @ W + b
    w = jax.random.uniform(kw, (fan_in, fan_out), jnp.float32, -bound, bound)
    b = jax.random.uniform(kb, (1, fan_out), jnp.float32, -bound, bound)
    return w, b


def init_params(key, input_dim, output_dim, latent_dim, num_layers):
    layers = []
    for i in range(num_layers):
        d_in = input_dim if i == 0 else latent_dim
        key, kq, kk, kv, ko = jax.random.split(key, 5)
        wq, bq = _init_linear(kq, d_in, latent_dim)
        wk, bk = _init_linear(kk, d_in, latent_dim)
        wv, bv = _init_linear(kv, d_in, latent_dim)
        wo, bo = _init_linear(ko, latent_dim, latent_dim)
        layers.append(dict(wq=wq, bq=bq, wk=wk, bk=bk, wv=wv, bv=bv, wo=wo, bo=bo))
    key, kf = jax.random.split(key)
    w_out, b_out = _init_linear(kf, latent_dim, output_dim)
    return dict(layers=layers, w_out=w_out, b_out=b_out)


# ----------------------------------------------------------------------------
# Pure-JAX reference (for correctness check) — uses the UNFOLDED parameters
# ----------------------------------------------------------------------------
def reference_forward(x, params):
    for layer in params["layers"]:
        q = x @ layer["wq"] + layer["bq"]
        k = x @ layer["wk"] + layer["bk"]
        v = x @ layer["wv"] + layer["bv"]
        L = q.shape[-1]
        scores = jnp.einsum("bqd,bkd->bqk", q, k) / (L ** 0.5)
        attn = jax.nn.softmax(scores, axis=-1)
        ctx = jnp.einsum("bqk,bkd->bqd", attn, v)
        x = ctx @ layer["wo"] + layer["bo"]
    return x @ params["w_out"] + params["b_out"]


# ----------------------------------------------------------------------------
if __name__ == "__main__":
    input_dim, output_dim, latent_dim, num_layers = 16, 8, 32, 2
    batch, seq = 2, 8

    key = jax.random.PRNGKey(0)
    key, kx, kp = jax.random.split(key, 3)

    x = jax.random.normal(kx, (batch, seq, input_dim), jnp.float32)
    params = init_params(kp, input_dim, output_dim, latent_dim, num_layers)

    out = stacked_attention_forward(x, params)
    out = jax.block_until_ready(out)

    ref = reference_forward(x, params)
    assert out.shape == (batch, seq, output_dim), out.shape
    # approx=True reciprocal in the softmax + weight folding -> slightly looser tol
    assert jnp.allclose(out, ref, atol=5e-3, rtol=5e-3), \
        float(jnp.max(jnp.abs(out - ref)))

    print("KERNEL_OK")
</pallas_src>

<mosaic_0001>
module attributes {stable_mosaic.version = 11 : i64} {
  func.func @_stacked_attn_kernel(%arg0: i32, %arg1: memref<1x8x16xf32, #tpu.memory_space<vmem>>, %arg2: memref<16x96xf32, #tpu.memory_space<vmem>>, %arg3: memref<1x96xf32, #tpu.memory_space<vmem>>, %arg4: memref<32x96xf32, #tpu.memory_space<vmem>>, %arg5: memref<1x96xf32, #tpu.memory_space<vmem>>, %arg6: memref<32x8xf32, #tpu.memory_space<vmem>>, %arg7: memref<1x8xf32, #tpu.memory_space<vmem>>, %arg8: memref<1x8x8xf32, #tpu.memory_space<vmem>>) attributes {dimension_semantics = [#tpu.dimension_semantics<parallel>], iteration_bounds = array<i64: 2>, scalar_prefetch = 0 : i64, scratch_operands = 0 : i64, tpu.core_type = #tpu.core_type<tc>, window_params = [{transform_indices = @transform_0, window_bounds = array<i64: 1, 8, 16>}, {pipeline_mode = #tpu.pipeline_mode<synchronous>, transform_indices = @transform_1, window_bounds = array<i64: 16, 96>}, {pipeline_mode = #tpu.pipeline_mode<synchronous>, transform_indices = @transform_2, window_bounds = array<i64: 1, 96>}, {pipeline_mode = #tpu.pipeline_mode<synchronous>, transform_indices = @transform_3, window_bounds = array<i64: 32, 96>}, {pipeline_mode = #tpu.pipeline_mode<synchronous>, transform_indices = @transform_4, window_bounds = array<i64: 1, 96>}, {pipeline_mode = #tpu.pipeline_mode<synchronous>, transform_indices = @transform_5, window_bounds = array<i64: 32, 8>}, {pipeline_mode = #tpu.pipeline_mode<synchronous>, transform_indices = @transform_6, window_bounds = array<i64: 1, 8>}, {transform_indices = @transform_7, window_bounds = array<i64: 1, 8, 8>}]} {
    %c0 = arith.constant 0 : index
    %c0_0 = arith.constant 0 : index
    %c0_1 = arith.constant 0 : index
    %0 = vector.load %arg1[%c0, %c0_0, %c0_1] : memref<1x8x16xf32, #tpu.memory_space<vmem>>, vector<1x8x16xf32>
    %1 = vector.shape_cast %0 : vector<1x8x16xf32> to vector<8x16xf32>
    %c0_2 = arith.constant 0 : index
    %c0_3 = arith.constant 0 : index
    %2 = vector.load %arg2[%c0_2, %c0_3] : memref<16x96xf32, #tpu.memory_space<vmem>>, vector<16x96xf32>
    %c0_4 = arith.constant 0 : index
    %c0_5 = arith.constant 0 : index
    %3 = vector.load %arg3[%c0_4, %c0_5] : memref<1x96xf32, #tpu.memory_space<vmem>>, vector<1x96xf32>
    %cst = arith.constant dense<0.000000e+00> : vector<8x96xf32>
    %4 = tpu.matmul %1, %2, %cst {dimension_numbers = #tpu.dot_dimension_numbers<[1], [0], [0], [1], [0, 0, 1, 1], [], []>} : vector<8x16xf32>, vector<16x96xf32>, vector<8x96xf32> -> vector<8x96xf32>
    %5 = vector.broadcast %3 : vector<1x96xf32> to vector<8x96xf32>
    %6 = arith.addf %4, %5 : vector<8x96xf32>
    %7 = vector.extract_strided_slice %6 {offsets = [0, 0], sizes = [8, 32], strides = [1, 1]} : vector<8x96xf32> to vector<8x32xf32>
    %8 = vector.extract_strided_slice %6 {offsets = [0, 32], sizes = [8, 32], strides = [1, 1]} : vector<8x96xf32> to vector<8x32xf32>
    %9 = vector.extract_strided_slice %6 {offsets = [0, 64], sizes = [8, 32], strides = [1, 1]} : vector<8x96xf32> to vector<8x32xf32>
    %cst_6 = arith.constant dense<0.000000e+00> : vector<8x8xf32>
    %10 = tpu.matmul %7, %8, %cst_6 {dimension_numbers = #tpu.dot_dimension_numbers<[1], [1], [0], [0], [0, 0, 1, 0], [], []>} : vector<8x32xf32>, vector<8x32xf32>, vector<8x8xf32> -> vector<8x8xf32>
    %cst_7 = arith.constant 0.176776692 : f32
    %11 = vector.broadcast %cst_7 : f32 to vector<8x8xf32>
    %12 = arith.mulf %10, %11 : vector<8x8xf32>
    %cst_8 = arith.constant dense<0xFF800000> : vector<8xf32>
    %13 = vector.multi_reduction <maximumf>, %12, %cst_8 [1] : vector<8x8xf32> to vector<8xf32>
    %14 = vector.shape_cast %13 : vector<8xf32> to vector<8x1xf32>
    %15 = vector.broadcast %14 : vector<8x1xf32> to vector<8x8xf32>
    %16 = arith.subf %12, %15 : vector<8x8xf32>
    %17 = math.exp %16 : vector<8x8xf32>
    %cst_9 = arith.constant dense<0.000000e+00> : vector<8xf32>
    %18 = vector.multi_reduction <add>, %17, %cst_9 [1] : vector<8x8xf32> to vector<8xf32>
    %19 = vector.shape_cast %18 : vector<8xf32> to vector<8x1xf32>
    %20 = tpu.reciprocal %19 {approx = true} : vector<8x1xf32> -> vector<8x1xf32>
    %21 = vector.broadcast %20 : vector<8x1xf32> to vector<8x8xf32>
    %22 = arith.mulf %17, %21 : vector<8x8xf32>
    %cst_10 = arith.constant dense<0.000000e+00> : vector<8x32xf32>
    %23 = tpu.matmul %22, %9, %cst_10 {dimension_numbers = #tpu.dot_dimension_numbers<[1], [0], [0], [1], [0, 0, 1, 1], [], []>} : vector<8x8xf32>, vector<8x32xf32>, vector<8x32xf32> -> vector<8x32xf32>
    %c0_11 = arith.constant 0 : index
    %c0_12 = arith.constant 0 : index
    %24 = vector.load %arg4[%c0_11, %c0_12] : memref<32x96xf32, #tpu.memory_space<vmem>>, vector<32x96xf32>
    %c0_13 = arith.constant 0 : index
    %c0_14 = arith.constant 0 : index
    %25 = vector.load %arg5[%c0_13, %c0_14] : memref<1x96xf32, #tpu.memory_space<vmem>>, vector<1x96xf32>
    %cst_15 = arith.constant dense<0.000000e+00> : vector<8x96xf32>
    %26 = tpu.matmul %23, %24, %cst_15 {dimension_numbers = #tpu.dot_dimension_numbers<[1], [0], [0], [1], [0, 0, 1, 1], [], []>} : vector<8x32xf32>, vector<32x96xf32>, vector<8x96xf32> -> vector<8x96xf32>
    %27 = vector.broadcast %25 : vector<1x96xf32> to vector<8x96xf32>
    %28 = arith.addf %26, %27 : vector<8x96xf32>
    %29 = vector.extract_strided_slice %28 {offsets = [0, 0], sizes = [8, 32], strides = [1, 1]} : vector<8x96xf32> to vector<8x32xf32>
    %30 = vector.extract_strided_slice %28 {offsets = [0, 32], sizes = [8, 32], strides = [1, 1]} : vector<8x96xf32> to vector<8x32xf32>
    %31 = vector.extract_strided_slice %28 {offsets = [0, 64], sizes = [8, 32], strides = [1, 1]} : vector<8x96xf32> to vector<8x32xf32>
    %cst_16 = arith.constant dense<0.000000e+00> : vector<8x8xf32>
    %32 = tpu.matmul %29, %30, %cst_16 {dimension_numbers = #tpu.dot_dimension_numbers<[1], [1], [0], [0], [0, 0, 1, 0], [], []>} : vector<8x32xf32>, vector<8x32xf32>, vector<8x8xf32> -> vector<8x8xf32>
    %cst_17 = arith.constant 0.176776692 : f32
    %33 = vector.broadcast %cst_17 : f32 to vector<8x8xf32>
    %34 = arith.mulf %32, %33 : vector<8x8xf32>
    %cst_18 = arith.constant dense<0xFF800000> : vector<8xf32>
    %35 = vector.multi_reduction <maximumf>, %34, %cst_18 [1] : vector<8x8xf32> to vector<8xf32>
    %36 = vector.shape_cast %35 : vector<8xf32> to vector<8x1xf32>
    %37 = vector.broadcast %36 : vector<8x1xf32> to vector<8x8xf32>
    %38 = arith.subf %34, %37 : vector<8x8xf32>
    %39 = math.exp %38 : vector<8x8xf32>
    %cst_19 = arith.constant dense<0.000000e+00> : vector<8xf32>
    %40 = vector.multi_reduction <add>, %39, %cst_19 [1] : vector<8x8xf32> to vector<8xf32>
    %41 = vector.shape_cast %40 : vector<8xf32> to vector<8x1xf32>
    %42 = tpu.reciprocal %41 {approx = true} : vector<8x1xf32> -> vector<8x1xf32>
    %43 = vector.broadcast %42 : vector<8x1xf32> to vector<8x8xf32>
    %44 = arith.mulf %39, %43 : vector<8x8xf32>
    %cst_20 = arith.constant dense<0.000000e+00> : vector<8x32xf32>
    %45 = tpu.matmul %44, %31, %cst_20 {dimension_numbers = #tpu.dot_dimension_numbers<[1], [0], [0], [1], [0, 0, 1, 1], [], []>} : vector<8x8xf32>, vector<8x32xf32>, vector<8x32xf32> -> vector<8x32xf32>
    %c0_21 = arith.constant 0 : index
    %c0_22 = arith.constant 0 : index
    %46 = vector.load %arg6[%c0_21, %c0_22] : memref<32x8xf32, #tpu.memory_space<vmem>>, vector<32x8xf32>
    %cst_23 = arith.constant dense<0.000000e+00> : vector<8x8xf32>
    %47 = tpu.matmul %45, %46, %cst_23 {dimension_numbers = #tpu.dot_dimension_numbers<[1], [0], [0], [1], [0, 0, 1, 1], [], []>} : vector<8x32xf32>, vector<32x8xf32>, vector<8x8xf32> -> vector<8x8xf32>
    %c0_24 = arith.constant 0 : index
    %c0_25 = arith.constant 0 : index
    %48 = vector.load %arg7[%c0_24, %c0_25] : memref<1x8xf32, #tpu.memory_space<vmem>>, vector<1x8xf32>
    %49 = vector.broadcast %48 : vector<1x8xf32> to vector<8x8xf32>
    %50 = arith.addf %47, %49 : vector<8x8xf32>
    %c0_26 = arith.constant 0 : index
    %c0_27 = arith.constant 0 : index
    %c0_28 = arith.constant 0 : index
    %51 = vector.load %arg8[%c0_26, %c0_27, %c0_28] : memref<1x8x8xf32, #tpu.memory_space<vmem>>, vector<1x8x8xf32>
    %52 = vector.shape_cast %51 : vector<1x8x8xf32> to vector<8x8xf32>
    %53 = vector.shape_cast %50 : vector<8x8xf32> to vector<1x8x8xf32>
    tpu.vector_store %arg8[%c0_26, %c0_27, %c0_28], %53 {strides = array<i32>} : memref<1x8x8xf32, #tpu.memory_space<vmem>>, vector<1x8x8xf32>,
    return
  }
  func.func @transform_0(%arg0: i32) -> (i32, i32, i32) {
    %c0_i32 = arith.constant 0 : i32
    %c0_i32_0 = arith.constant 0 : i32
    %c0_i32_1 = arith.constant 0 : i32
    return %arg0, %c0_i32, %c0_i32_0 : i32, i32, i32
  }
  func.func @transform_1(%arg0: i32) -> (i32, i32) {
    %c0_i32 = arith.constant 0 : i32
    %c0_i32_0 = arith.constant 0 : i32
    %c0_i32_1 = arith.constant 0 : i32
    return %c0_i32, %c0_i32_0 : i32, i32
  }
  func.func @transform_2(%arg0: i32) -> (i32, i32) {
    %c0_i32 = arith.constant 0 : i32
    %c0_i32_0 = arith.constant 0 : i32
    %c0_i32_1 = arith.constant 0 : i32
    return %c0_i32, %c0_i32_0 : i32, i32
  }
  func.func @transform_3(%arg0: i32) -> (i32, i32) {
    %c0_i32 = arith.constant 0 : i32
    %c0_i32_0 = arith.constant 0 : i32
    %c0_i32_1 = arith.constant 0 : i32
    return %c0_i32, %c0_i32_0 : i32, i32
  }
  func.func @transform_4(%arg0: i32) -> (i32, i32) {
    %c0_i32 = arith.constant 0 : i32
    %c0_i32_0 = arith.constant 0 : i32
    %c0_i32_1 = arith.constant 0 : i32
    return %c0_i32, %c0_i32_0 : i32, i32
  }
  func.func @transform_5(%arg0: i32) -> (i32, i32) {
    %c0_i32 = arith.constant 0 : i32
    %c0_i32_0 = arith.constant 0 : i32
    %c0_i32_1 = arith.constant 0 : i32
    return %c0_i32, %c0_i32_0 : i32, i32
  }
  func.func @transform_6(%arg0: i32) -> (i32, i32) {
    %c0_i32 = arith.constant 0 : i32
    %c0_i32_0 = arith.constant 0 : i32
    %c0_i32_1 = arith.constant 0 : i32
    return %c0_i32, %c0_i32_0 : i32, i32
  }
  func.func @transform_7(%arg0: i32) -> (i32, i32, i32) {
    %c0_i32 = arith.constant 0 : i32
    %c0_i32_0 = arith.constant 0 : i32
    %c0_i32_1 = arith.constant 0 : i32
    return %arg0, %c0_i32, %c0_i32_0 : i32, i32, i32
  }
}

</mosaic_0001>

<llo_original>
// kernel: tpu_custom_call.1
$region0: #{tpu_custom_call.1}
  #allocation0 [shape = 'u32[]', space=smem, size = 0x4, offset = 0x4, fixed_abs, tag = 'smem constant byte address 0x4 - core index']
  #allocation1 [shape = 'u32[144,128]{1,0:T(1,128)}', space=vmem, size = 0x12000, scoped, tag = 'internal scratch']
  %s0 = inlined_call_operand.vmem [shape: f32[2,8,16], index: 0, kind: input, shape index: {}]
  %s1 = inlined_call_operand.hbm [shape: f32[16,96], index: 1, kind: input, shape index: {}]
  %s2 = inlined_call_operand.vmem [shape: f32[1,96], index: 2, kind: input, shape index: {}]
  %s3 = inlined_call_operand.vmem [shape: f32[32,96], index: 3, kind: input, shape index: {}]
  %s4 = inlined_call_operand.vmem [shape: f32[1,96], index: 4, kind: input, shape index: {}]
  %s5 = inlined_call_operand.vmem [shape: f32[32,8], index: 5, kind: input, shape index: {}]
  %s6 = inlined_call_operand.vmem [shape: f32[1,8], index: 6, kind: input, shape index: {}]
  %s7 = inlined_call_operand.hbm [shape: f32[2,8,8], index: 7, kind: output, shape index: {}]
  %s8 = sld [smem:[#allocation0]]
  $region65: #{tpu_custom_call.1} parent=0
    _
  %s10 = ssub.s32 1, %s8
  %s11 = scalar_select 0, %s10, %s8
  $region1: #{tpu_custom_call.1} parent=0
    #allocation2 [shape = 'u8[8192]{0}', space=vmem, size = 0x2000, scoped, tag = 'input window, operand 1, single buffered']
    #allocation3 [shape = 's32[2]{0}', space=sflag, size = 0x8, scoped, tag = 'scoped memory for tpu_custom_call.1']
    #allocation4 [shape = 's32[2]{0}', space=sflag, size = 0x8, scoped, tag = 'scoped memory for tpu_custom_call.1']
    #allocation5 [shape = 'u8[8192]{0}', space=vmem, size = 0x2000, scoped, tag = 'output window, operand 0']
    %12 = vsyncpa [#allocation3], 0
    %13 = vsyncpa [#allocation4], 0
    %s14 = scalar_lea.sflag [#allocation4], 1
    %15 = vsyncpa %s14, 0
    loop: start=0, step=1, limit=4
    $region2: #{tpu_custom_call.1} parent=1 // loop_pre_header
      _
    $region3: #{tpu_custom_call.1} parent=1 // loop_header
      %s17 = sphi 0, %s21
      %p18 = scmp.ge.s32.totalorder %s17, 4
      %s27 = sphi 0, %s29
      %s30 = sphi 0, %s27
      %s31 = sphi 0, %s30
      %s47 = sphi 0, %s31
      %s51 = sphi 0, %s51
      %s53 = sphi 0, %s51
      %s54 = sphi 0, %s53
      %s68 = sphi 0, %s54
      %s72 = sphi 0, %s72
      %s74 = sphi 0, %s72
      %s75 = sphi 0, %s74
      %s89 = sphi 0, %s75
      %s93 = sphi 0, %s93
      %s95 = sphi 0, %s93
      %s96 = sphi 0, %s95
      %s110 = sphi 0, %s96
      %s114 = sphi 0, %s114
      %s116 = sphi 0, %s114
      %s117 = sphi 0, %s116
      %s131 = sphi 0, %s117
      %s135 = sphi 0, %s135
      %s137 = sphi 0, %s135
      %s138 = sphi 0, %s137
      %s152 = sphi 0, %s138
      %s156 = sphi 0, %s156
      %s158 = sphi 0, %s156
      %s159 = sphi 0, %s158
      %s173 = sphi 0, %s159
      %s179 = sphi 0, %s181
      %s182 = sphi 0, %s179
      %s183 = sphi 0, %s182
      %s199 = sphi 0, %s183
    $region4: #{tpu_custom_call.1} parent=1 // loop_header_branch
      %20 = sbr.rel (%p18) target = $region8
    $region5: #{tpu_custom_call.1} parent=1 // loop_body
      %s22 = ssub.s32 %s17, 1
      %s23 = ssub.s32 %s17, 2
      %s24 = sadd.s32 %s17, 1
      %s25 = ssub.s32 %s17, %s24
      %p26 = scmp.eq.s32.totalorder %s25, 0
      %s28 = sadd.s32 %s27, 1
      %s29 = scalar_select %p26, %s27, %s28
      %p32 = pneg %p26
      %p33 = scmp.eq.s32.totalorder %s17, 1
      %p34 = por %p32, %p33
      %p35 = scmp.ne.s32.totalorder %s27, %s30
      %p36 = scmp.eq.s32.totalorder %s17, 0
      %p37 = por %p35, %p36
      %p38 = scmp.ne.s32.totalorder %s27, %s30
      %p39 = scmp.eq.s32.totalorder %s22, 1
      %p40 = por %p38, %p39
      %p41 = scmp.ne.s32.totalorder %s30, %s31
      %p42 = scmp.eq.s32.totalorder %s22, 0
      %p43 = por %p41, %p42
      %p44 = scmp.ne.s32.totalorder %s30, %s31
      %p45 = scmp.eq.s32.totalorder %s23, 1
      %p46 = por %p44, %p45
      %p48 = scmp.ne.s32.totalorder %s31, %s47
      %p49 = scmp.eq.s32.totalorder %s23, 0
      %p50 = por %p48, %p49
      %s52 = sadd.s32 %s51, 1
      %p55 = scmp.eq.s32.totalorder %s17, 1
      %p56 = scmp.ne.s32.totalorder %s51, %s53
      %p57 = scmp.eq.s32.totalorder %s17, 0
      %p58 = por %p56, %p57
      %p59 = scmp.ne.s32.totalorder %s51, %s53
      %p60 = scmp.eq.s32.totalorder %s22, 1
      %p61 = por %p59, %p60
      %p62 = scmp.ne.s32.totalorder %s53, %s54
      %p63 = scmp.eq.s32.totalorder %s22, 0
      %p64 = por %p62, %p63
      %p65 = scmp.ne.s32.totalorder %s53, %s54
      %p66 = scmp.eq.s32.totalorder %s23, 1
      %p67 = por %p65, %p66
      %p69 = scmp.ne.s32.totalorder %s54, %s68
      %p70 = scmp.eq.s32.totalorder %s23, 0
      %p71 = por %p69, %p70
      %s73 = sadd.s32 %s72, 1
      %p76 = scmp.eq.s32.totalorder %s17, 1
      %p77 = scmp.ne.s32.totalorder %s72, %s74
      %p78 = scmp.eq.s32.totalorder %s17, 0
      %p79 = por %p77, %p78
      %p80 = scmp.ne.s32.totalorder %s72, %s74
      %p81 = scmp.eq.s32.totalorder %s22, 1
      %p82 = por %p80, %p81
      %p83 = scmp.ne.s32.totalorder %s74, %s75
      %p84 = scmp.eq.s32.totalorder %s22, 0
      %p85 = por %p83, %p84
      %p86 = scmp.ne.s32.totalorder %s74, %s75
      %p87 = scmp.eq.s32.totalorder %s23, 1
      %p88 = por %p86, %p87
      %p90 = scmp.ne.s32.totalorder %s75, %s89
      %p91 = scmp.eq.s32.totalorder %s23, 0
      %p92 = por %p90, %p91
      %s94 = sadd.s32 %s93, 1
      %p97 = scmp.eq.s32.totalorder %s17, 1
      %p98 = scmp.ne.s32.totalorder %s93, %s95
      %p99 = scmp.eq.s32.totalorder %s17, 0
      %p100 = por %p98, %p99
      %p101 = scmp.ne.s32.totalorder %s93, %s95
      %p102 = scmp.eq.s32.totalorder %s22, 1
      %p103 = por %p101, %p102
      %p104 = scmp.ne.s32.totalorder %s95, %s96
      %p105 = scmp.eq.s32.totalorder %s22, 0
      %p106 = por %p104, %p105
      %p107 = scmp.ne.s32.totalorder %s95, %s96
      %p108 = scmp.eq.s32.totalorder %s23, 1
      %p109 = por %p107, %p108
      %p111 = scmp.ne.s32.totalorder %s96, %s110
      %p112 = scmp.eq.s32.totalorder %s23, 0
      %p113 = por %p111, %p112
      %s115 = sadd.s32 %s114, 1
      %p118 = scmp.eq.s32.totalorder %s17, 1
      %p119 = scmp.ne.s32.totalorder %s114, %s116
      %p120 = scmp.eq.s32.totalorder %s17, 0
      %p121 = por %p119, %p120
      %p122 = scmp.ne.s32.totalorder %s114, %s116
      %p123 = scmp.eq.s32.totalorder %s22, 1
      %p124 = por %p122, %p123
      %p125 = scmp.ne.s32.totalorder %s116, %s117
      %p126 = scmp.eq.s32.totalorder %s22, 0
      %p127 = por %p125, %p126
      %p128 = scmp.ne.s32.totalorder %s116, %s117
      %p129 = scmp.eq.s32.totalorder %s23, 1
      %p130 = por %p128, %p129
      %p132 = scmp.ne.s32.totalorder %s117, %s131
      %p133 = scmp.eq.s32.totalorder %s23, 0
      %p134 = por %p132, %p133
      %s136 = sadd.s32 %s135, 1
      %p139 = scmp.eq.s32.totalorder %s17, 1
      %p140 = scmp.ne.s32.totalorder %s135, %s137
      %p141 = scmp.eq.s32.totalorder %s17, 0
      %p142 = por %p140, %p141
      %p143 = scmp.ne.s32.totalorder %s135, %s137
      %p144 = scmp.eq.s32.totalorder %s22, 1
      %p145 = por %p143, %p144
      %p146 = scmp.ne.s32.totalorder %s137, %s138
      %p147 = scmp.eq.s32.totalorder %s22, 0
      %p148 = por %p146, %p147
      %p149 = scmp.ne.s32.totalorder %s137, %s138
      %p150 = scmp.eq.s32.totalorder %s23, 1
      %p151 = por %p149, %p150
      %p153 = scmp.ne.s32.totalorder %s138, %s152
      %p154 = scmp.eq.s32.totalorder %s23, 0
      %p155 = por %p153, %p154
      %s157 = sadd.s32 %s156, 1
      %p160 = scmp.eq.s32.totalorder %s17, 1
      %p161 = scmp.ne.s32.totalorder %s156, %s158
      %p162 = scmp.eq.s32.totalorder %s17, 0
      %p163 = por %p161, %p162
      %p164 = scmp.ne.s32.totalorder %s156, %s158
      %p165 = scmp.eq.s32.totalorder %s22, 1
      %p166 = por %p164, %p165
      %p167 = scmp.ne.s32.totalorder %s158, %s159
      %p168 = scmp.eq.s32.totalorder %s22, 0
      %p169 = por %p167, %p168
      %p170 = scmp.ne.s32.totalorder %s158, %s159
      %p171 = scmp.eq.s32.totalorder %s23, 1
      %p172 = por %p170, %p171
      %p174 = scmp.ne.s32.totalorder %s159, %s173
      %p175 = scmp.eq.s32.totalorder %s23, 0
      %p176 = por %p174, %p175
      %s177 = ssub.s32 %s17, %s24
      %p178 = scmp.eq.s32.totalorder %s177, 0
      %s180 = sadd.s32 %s179, 1
      %s181 = scalar_select %p178, %s179, %s180
      %p184 = pneg %p178
      %p185 = scmp.eq.s32.totalorder %s17, 1
      %p186 = por %p184, %p185
      %p187 = scmp.ne.s32.totalorder %s179, %s182
      %p188 = scmp.eq.s32.totalorder %s17, 0
      %p189 = por %p187, %p188
      %p190 = scmp.ne.s32.totalorder %s179, %s182
      %p191 = scmp.eq.s32.totalorder %s22, 1
      %p192 = por %p190, %p191
      %p193 = scmp.ne.s32.totalorder %s182, %s183
      %p194 = scmp.eq.s32.totalorder %s22, 0
      %p195 = por %p193, %p194
      %p196 = scmp.ne.s32.totalorder %s182, %s183
      %p197 = scmp.eq.s32.totalorder %s23, 1
      %p198 = por %p196, %p197
      %p200 = scmp.ne.s32.totalorder %s183, %s199
      %p201 = scmp.eq.s32.totalorder %s23, 0
      %p202 = por %p200, %p201
      %p203 = scmp.le.s32.totalorder 1, %s17
      %p204 = scmp.lt.s32.totalorder %s17, 3
      %p205 = pnand %p203, %p204
      %p206 = pneg %p205
      // Predicated region
      $region9: #{tpu_custom_call.1} parent=5 // pred_check
        _
      $region10: #{tpu_custom_call.1} parent=5 // pred_check_branch
        %208 = sbr.rel (%p205) target = $region12
      $region11: #{tpu_custom_call.1} parent=5 // pred_region
        %s209 = ssub.s32 %s17, 1
        // Predicated region
        $region13: #{tpu_custom_call.1} parent=11 // pred_check
          %p210 = pneg %p64
        $region14: #{tpu_custom_call.1} parent=11 // pred_check_branch
          %212 = sbr.rel (%p210) target = $region16
        $region15: #{tpu_custom_call.1} parent=11 // pred_region
          %s214 = ssub.s32 256, 256
          %215 = vsyncadd [#allocation3], %s214
          %s216 = sshll.u32 [#allocation2], 4
          %s217 = int_to_ptr.vmem [resolvable:$true] %s216
          %222 = dma.hbm_to_vmem [thread:$0]  %s1, 256, %s217, [#allocation3], 128, 128, 8
        $region16: #{tpu_custom_call.1} parent=11 // pred_fallthru
          _
        // Predicated region
        $region17: #{tpu_custom_call.1} parent=11 // pred_check
          %p223 = pneg %p85
        $region18: #{tpu_custom_call.1} parent=11 // pred_check_branch
          %225 = sbr.rel (%p223) target = $region20
        $region19: #{tpu_custom_call.1} parent=11 // pred_region
          _
        $region20: #{tpu_custom_call.1} parent=11 // pred_fallthru
          _
        // Predicated region
        $region21: #{tpu_custom_call.1} parent=11 // pred_check
          %p226 = pneg %p106
        $region22: #{tpu_custom_call.1} parent=11 // pred_check_branch
          %228 = sbr.rel (%p226) target = $region24
        $region23: #{tpu_custom_call.1} parent=11 // pred_region
          _
        $region24: #{tpu_custom_call.1} parent=11 // pred_fallthru
          _
        // Predicated region
        $region25: #{tpu_custom_call.1} parent=11 // pred_check
          %p229 = pneg %p127
        $region26: #{tpu_custom_call.1} parent=11 // pred_check_branch
          %231 = sbr.rel (%p229) target = $region28
        $region27: #{tpu_custom_call.1} parent=11 // pred_region
          _
        $region28: #{tpu_custom_call.1} parent=11 // pred_fallthru
          _
        // Predicated region
        $region29: #{tpu_custom_call.1} parent=11 // pred_check
          %p232 = pneg %p148
        $region30: #{tpu_custom_call.1} parent=11 // pred_check_branch
          %234 = sbr.rel (%p232) target = $region32
        $region31: #{tpu_custom_call.1} parent=11 // pred_region
          _
        $region32: #{tpu_custom_call.1} parent=11 // pred_fallthru
          _
        // Predicated region
        $region33: #{tpu_custom_call.1} parent=11 // pred_check
          %p235 = pneg %p169
        $region34: #{tpu_custom_call.1} parent=11 // pred_check_branch
          %237 = sbr.rel (%p235) target = $region36
        $region35: #{tpu_custom_call.1} parent=11 // pred_region
          _
        $region36: #{tpu_custom_call.1} parent=11 // pred_fallthru
          _
      $region12: #{tpu_custom_call.1} parent=5 // pred_fallthru
        _
      %p238 = scmp.lt.s32.totalorder %s17, 2
      // Predicated region
      $region37: #{tpu_custom_call.1} parent=5 // pred_check
        %p239 = pneg %p238
      $region38: #{tpu_custom_call.1} parent=5 // pred_check_branch
        %241 = sbr.rel (%p239) target = $region40
      $region39: #{tpu_custom_call.1} parent=5 // pred_region
        // Predicated region
        $region41: #{tpu_custom_call.1} parent=39 // pred_check
          %p242 = pneg %p37
        $region42: #{tpu_custom_call.1} parent=39 // pred_check_branch
          %244 = sbr.rel (%p242) target = $region44
        $region43: #{tpu_custom_call.1} parent=39 // pred_region
          %p245 = scmp.lt.s32.totalorder %s17, 1
          %s246 = scalar_select %p245, %s17, 1
          %s247 = smul.addr %s246, 8
          %s248 = scalar_lea.vmem %s0, %s247
        $region44: #{tpu_custom_call.1} parent=39 // pred_fallthru
          _
      $region40: #{tpu_custom_call.1} parent=5 // pred_fallthru
        _
      %p249 = scmp.le.s32.totalorder 1, %s17
      %p250 = scmp.lt.s32.totalorder %s17, 3
      %p251 = pnand %p249, %p250
      %p252 = pneg %p251
      // Predicated region
      $region45: #{tpu_custom_call.1} parent=5 // pred_check
        _
      $region46: #{tpu_custom_call.1} parent=5 // pred_check_branch
        %254 = sbr.rel (%p251) target = $region48
      $region47: #{tpu_custom_call.1} parent=5 // pred_region
        %s255 = ssub.s32 %s17, 1
        // Predicated region
        $region49: #{tpu_custom_call.1} parent=47 // pred_check
          %p256 = pneg %p64
        $region50: #{tpu_custom_call.1} parent=47 // pred_check_branch
          %258 = sbr.rel (%p256) target = $region52
        $region51: #{tpu_custom_call.1} parent=47 // pred_region
          %259 = dma.done [#allocation3], 256
        $region52: #{tpu_custom_call.1} parent=47 // pred_fallthru
          _
        %p260 = scmp.lt.s32.totalorder %s22, 1
        %s261 = scalar_select %p260, %s22, 1
        %s262 = smul.addr %s261, 8
        %s263 = scalar_lea.vmem %s0, %s262
        %p264 = pneg %p43
        %p265 = pneg %p40
        %p266 = pneg %p64
        %p267 = pneg %p61
        %p268 = pneg %p85
        %p269 = pneg %p82
        %p270 = pneg %p106
        %p271 = pneg %p103
        %p272 = pneg %p127
        %p273 = pneg %p124
        %p274 = pneg %p148
        %p275 = pneg %p145
        %p276 = pneg %p169
        %p277 = pneg %p166
        %p278 = pneg %p195
        %p279 = pneg %p192
        %s280 = sand.u32 %s182, 1
        %s281 = scalar_lea.sflag [#allocation4], %s280
        %s282 = sand.u32 %s182, 1
        %s283 = smul.addr %s282, 8
        %s284 = scalar_lea.vmem [#allocation5], %s283
        %p285 = scmp.lt.s32.totalorder %s22, 1
        %s286 = scalar_select %p285, %s22, 1
        %s287 = smul.addr %s286, 8
        %s288 = scalar_lea.vmem %s0, %s287
        %v289 = vld [vmem:[%s288] sm:$0xff]
        %v290 = vld [vmem:[#allocation2] sm:$0xff]
        %v291 = vld [vmem:[#allocation2 + $0x8] sm:$0xff]
        %v292 = vld [vmem:[%s2] sm:$0x1]
        %v294 = vlaneseq
        %v295 = vshrl.u32 %v294, 7
        %v296 = vsub.s32 0, %v295
        %v297 = vrot.slane %v292, %v296
        %vm299 = vcmask 130048
        %v301 = vsel %vm299, %v289, 0
        %303 = vmatprep.subr.mxu0 0.0
        %304 = vmatpush1.msra.mxu0 %v290
        %305 = vmatprep.subr.mxu0 0.0
        %306 = vmatpush1.msra.mxu0 %v291
        %307 = vmatprep.subr.mxu0 0.0
        %308 = vmatpush1.msra.mxu0 0.0
        %309 = vmatprep.subr.mxu0 0.0
        %310 = vmatpush1.msra.mxu0 0.0
        %311 = vmatprep.subr.mxu0 0.0
        %312 = vmatpush1.msra.mxu0 0.0
        %313 = vmatprep.subr.mxu0 0.0
        %314 = vmatpush1.msra.mxu0 0.0
        %315 = vmatprep.subr.mxu0 0.0
        %316 = vmatpush1.msra.mxu0 0.0
        %317 = vmatprep.subr.mxu0 0.0
        %318 = vmatpush1.msra.mxu0 0.0
        %319 = vmatprep.subr.mxu0 0.0
        %320 = vmatpush1.msra.mxu0 0.0
        %321 = vmatprep.subr.mxu0 0.0
        %322 = vmatpush1.msra.mxu0 0.0
        %323 = vmatprep.subr.mxu0 0.0
        %324 = vmatpush1.msra.mxu0 0.0
        %325 = vmatprep.subr.mxu0 0.0
        %326 = vmatpush1.msra.mxu0 0.0
        %327 = vmatprep.subr.mxu0 0.0
        %328 = vmatpush1.msra.mxu0 0.0
        %329 = vmatprep.subr.mxu0 0.0
        %330 = vmatpush1.msra.mxu0 0.0
        %331 = vmatprep.subr.mxu0 0.0
        %332 = vmatpush1.msra.mxu0 0.0
        %333 = vmatprep.subr.mxu0 0.0
        %334 = vmatpush1.msra.mxu0 0.0
        %335 = vmatprep.subr.mxu0 0.0
        %336 = vmatpush1.msra.mxu0 0.0
        %337 = vmatprep.subr.mxu0 0.0
        %338 = vmatpush1.msra.mxu0 0.0
        %339 = vmatprep.subr.mxu0 0.0
        %340 = vmatpush1.msra.mxu0 0.0
        %341 = vmatprep.subr.mxu0 0.0
        %342 = vmatpush1.msra.mxu0 0.0
        %343 = vmatprep.subr.mxu0 0.0
        %344 = vmatpush1.msra.mxu0 0.0
        %345 = vmatprep.subr.mxu0 0.0
        %346 = vmatpush1.msra.mxu0 0.0
        %347 = vmatprep.subr.mxu0 0.0
        %348 = vmatpush1.msra.mxu0 0.0
        %349 = vmatprep.subr.mxu0 0.0
        %350 = vmatpush1.msra.mxu0 0.0
        %351 = vmatprep.subr.mxu0 0.0
        %352 = vmatpush1.msra.mxu0 0.0
        %353 = vmatprep.subr.mxu0 0.0
        %354 = vmatpush1.msra.mxu0 0.0
        %355 = vmatprep.subr.mxu0 0.0
        %356 = vmatpush1.msra.mxu0 0.0
        %357 = vmatprep.subr.mxu0 0.0
        %358 = vmatpush1.msra.mxu0 0.0
        %359 = vmatprep.subr.mxu0 0.0
        %360 = vmatpush1.msra.mxu0 0.0
        %361 = vmatprep.subr.mxu0 0.0
        %362 = vmatpush1.msra.mxu0 0.0
        %363 = vmatprep.subr.mxu0 0.0
        %364 = vmatpush1.msra.mxu0 0.0
        %365 = vmatprep.subr.mxu0 0.0
        %366 = vmatpush1.msra.mxu0 0.0
        %367 = vmatprep.mubr.f32.mxu0 0.0
        %368 = vmatmul.mubr.f32.gmra.mrb[0].mxu0 %v301
        %v369 = vpop.f32.mrb[0].mxu0
        %v370 = vadd.f32 %v297, %v369
        %v371 = vpop.f32.mrb[0].mxu0
        %372 = vdwg.mxu0
        %374 = vrot.lane.b32.xlu0 %v370, 96
        %v375 = vpop.permute.xlu0 %374
        %vm376 = vcmask 261120
        %v377 = vsel %vm376, %v370, 0
        %v379 = vsel %vm376, %v375, 0
        %381 = vmatprep.subr.mxu0 0.0
        %382 = vmatpush1.xpose.msra.mxu0 %v379
        %383 = vmatprep.subr.mxu0 0.0
        %384 = vmatpush1.xpose.msra.mxu0 0.0
        %385 = vmatprep.subr.mxu0 0.0
        %386 = vmatpush1.xpose.msra.mxu0 0.0
        %387 = vmatprep.subr.mxu0 0.0
        %388 = vmatpush1.xpose.msra.mxu0 0.0
        %389 = vmatprep.subr.mxu0 0.0
        %390 = vmatpush1.xpose.msra.mxu0 0.0
        %391 = vmatprep.subr.mxu0 0.0
        %392 = vmatpush1.xpose.msra.mxu0 0.0
        %393 = vmatprep.subr.mxu0 0.0
        %394 = vmatpush1.xpose.msra.mxu0 0.0
        %395 = vmatprep.subr.mxu0 0.0
        %396 = vmatpush1.xpose.msra.mxu0 0.0
        %397 = vmatprep.subr.mxu0 0.0
        %398 = vmatpush1.xpose.msra.mxu0 0.0
        %399 = vmatprep.subr.mxu0 0.0
        %400 = vmatpush1.xpose.msra.mxu0 0.0
        %401 = vmatprep.subr.mxu0 0.0
        %402 = vmatpush1.xpose.msra.mxu0 0.0
        %403 = vmatprep.subr.mxu0 0.0
        %404 = vmatpush1.xpose.msra.mxu0 0.0
        %405 = vmatprep.subr.mxu0 0.0
        %406 = vmatpush1.xpose.msra.mxu0 0.0
        %407 = vmatprep.subr.mxu0 0.0
        %408 = vmatpush1.xpose.msra.mxu0 0.0
        %409 = vmatprep.subr.mxu0 0.0
        %410 = vmatpush1.xpose.msra.mxu0 0.0
        %411 = vmatprep.subr.mxu0 0.0
        %412 = vmatpush1.xpose.msra.mxu0 0.0
        %413 = vmatprep.subr.mxu0 0.0
        %414 = vmatpush1.xpose.msra.mxu0 0.0
        %415 = vmatprep.subr.mxu0 0.0
        %416 = vmatpush1.xpose.msra.mxu0 0.0
        %417 = vmatprep.subr.mxu0 0.0
        %418 = vmatpush1.xpose.msra.mxu0 0.0
        %419 = vmatprep.subr.mxu0 0.0
        %420 = vmatpush1.xpose.msra.mxu0 0.0
        %421 = vmatprep.subr.mxu0 0.0
        %422 = vmatpush1.xpose.msra.mxu0 0.0
        %423 = vmatprep.subr.mxu0 0.0
        %424 = vmatpush1.xpose.msra.mxu0 0.0
        %425 = vmatprep.subr.mxu0 0.0
        %426 = vmatpush1.xpose.msra.mxu0 0.0
        %427 = vmatprep.subr.mxu0 0.0
        %428 = vmatpush1.xpose.msra.mxu0 0.0
        %429 = vmatprep.subr.mxu0 0.0
        %430 = vmatpush1.xpose.msra.mxu0 0.0
        %431 = vmatprep.subr.mxu0 0.0
        %432 = vmatpush1.xpose.msra.mxu0 0.0
        %433 = vmatprep.subr.mxu0 0.0
        %434 = vmatpush1.xpose.msra.mxu0 0.0
        %435 = vmatprep.subr.mxu0 0.0
        %436 = vmatpush1.xpose.msra.mxu0 0.0
        %437 = vmatprep.subr.mxu0 0.0
        %438 = vmatpush1.xpose.msra.mxu0 0.0
        %439 = vmatprep.subr.mxu0 0.0
        %440 = vmatpush1.xpose.msra.mxu0 0.0
        %441 = vmatprep.subr.mxu0 0.0
        %442 = vmatpush1.xpose.msra.mxu0 0.0
        %443 = vmatprep.subr.mxu0 0.0
        %444 = vmatpush1.xpose.msra.mxu0 0.0
        %445 = vmatprep.mubr.f32.mxu0 0.0
        %446 = vmatmul.mubr.f32.gmra.mrb[0].mxu0 %v377
        %v447 = vpop.f32.mrb[0].mxu0
        %v448 = vadd.f32 0.0, %v447
        %v449 = vpop.f32.mrb[0].mxu0
        %450 = vdwg.mxu0
        %v451 = vmul.f32 %v448, 0.17677669
        %vm452 = vcmask 64512
        %v453 = vsel %vm452, %v451, -inf
        %454 = vmax.xlane.f32.xlu0 %v453
        %v455 = vpop.xlane.xlu0 %454
        %v456 = vsub.f32 %v451, %v455
        %v457 = vmul.f32 %v456, 1.442695
        %v458 = vpow.pop %v457
        %v459 = vsel %vm452, %v458, 0.0
        %460 = vadd.xlane.f32.xlu0 %v459
        %v461 = vpop.xlane.xlu0 %460
        %v462 = vrcp.pop %v461
        %v463 = vmul.f32 %v458, %v462
        %464 = vrot.lane.b32.xlu0 %v370, 64
        %v465 = vpop.permute.xlu0 %464
        %v468 = vsel %vm452, %v463, 0
        %470 = vmatprep.subr.mxu0 0.0
        %471 = vmatpush1.msra.mxu0 %v465
        %472 = vmatprep.subr.mxu0 0.0
        %473 = vmatpush1.msra.mxu0 0.0
        %474 = vmatprep.subr.mxu0 0.0
        %475 = vmatpush1.msra.mxu0 0.0
        %476 = vmatprep.subr.mxu0 0.0
        %477 = vmatpush1.msra.mxu0 0.0
        %478 = vmatprep.subr.mxu0 0.0
        %479 = vmatpush1.msra.mxu0 0.0
        %480 = vmatprep.subr.mxu0 0.0
        %481 = vmatpush1.msra.mxu0 0.0
        %482 = vmatprep.subr.mxu0 0.0
        %483 = vmatpush1.msra.mxu0 0.0
        %484 = vmatprep.subr.mxu0 0.0
        %485 = vmatpush1.msra.mxu0 0.0
        %486 = vmatprep.subr.mxu0 0.0
        %487 = vmatpush1.msra.mxu0 0.0
        %488 = vmatprep.subr.mxu0 0.0
        %489 = vmatpush1.msra.mxu0 0.0
        %490 = vmatprep.subr.mxu0 0.0
        %491 = vmatpush1.msra.mxu0 0.0
        %492 = vmatprep.subr.mxu0 0.0
        %493 = vmatpush1.msra.mxu0 0.0
        %494 = vmatprep.subr.mxu0 0.0
        %495 = vmatpush1.msra.mxu0 0.0
        %496 = vmatprep.subr.mxu0 0.0
        %497 = vmatpush1.msra.mxu0 0.0
        %498 = vmatprep.subr.mxu0 0.0
        %499 = vmatpush1.msra.mxu0 0.0
        %500 = vmatprep.subr.mxu0 0.0
        %501 = vmatpush1.msra.mxu0 0.0
        %502 = vmatprep.subr.mxu0 0.0
        %503 = vmatpush1.msra.mxu0 0.0
        %504 = vmatprep.subr.mxu0 0.0
        %505 = vmatpush1.msra.mxu0 0.0
        %506 = vmatprep.subr.mxu0 0.0
        %507 = vmatpush1.msra.mxu0 0.0
        %508 = vmatprep.subr.mxu0 0.0
        %509 = vmatpush1.msra.mxu0 0.0
        %510 = vmatprep.subr.mxu0 0.0
        %511 = vmatpush1.msra.mxu0 0.0
        %512 = vmatprep.subr.mxu0 0.0
        %513 = vmatpush1.msra.mxu0 0.0
        %514 = vmatprep.subr.mxu0 0.0
        %515 = vmatpush1.msra.mxu0 0.0
        %516 = vmatprep.subr.mxu0 0.0
        %517 = vmatpush1.msra.mxu0 0.0
        %518 = vmatprep.subr.mxu0 0.0
        %519 = vmatpush1.msra.mxu0 0.0
        %520 = vmatprep.subr.mxu0 0.0
        %521 = vmatpush1.msra.mxu0 0.0
        %522 = vmatprep.subr.mxu0 0.0
        %523 = vmatpush1.msra.mxu0 0.0
        %524 = vmatprep.subr.mxu0 0.0
        %525 = vmatpush1.msra.mxu0 0.0
        %526 = vmatprep.subr.mxu0 0.0
        %527 = vmatpush1.msra.mxu0 0.0
        %528 = vmatprep.subr.mxu0 0.0
        %529 = vmatpush1.msra.mxu0 0.0
        %530 = vmatprep.subr.mxu0 0.0
        %531 = vmatpush1.msra.mxu0 0.0
        %532 = vmatprep.subr.mxu0 0.0
        %533 = vmatpush1.msra.mxu0 0.0
        %534 = vmatprep.mubr.f32.mxu0 0.0
        %535 = vmatmul.mubr.f32.gmra.mrb[0].mxu0 %v468
        %v536 = vpop.f32.mrb[0].mxu0
        %v537 = vadd.f32 0.0, %v536
        %v538 = vpop.f32.mrb[0].mxu0
        %539 = vdwg.mxu0
        %v540 = vld [vmem:[%s3] sm:$0xff]
        %v541 = vld [vmem:[%s3 + $0x8] sm:$0xff]
        %v542 = vld [vmem:[%s3 + $0x10] sm:$0xff]
        %v543 = vld [vmem:[%s3 + $0x18] sm:$0xff]
        %v544 = vld [vmem:[%s4] sm:$0x1]
        %v546 = vlaneseq
        %v547 = vshrl.u32 %v546, 7
        %v548 = vsub.s32 0, %v547
        %v549 = vrot.slane %v544, %v548
        %v552 = vsel %vm376, %v537, 0
        %554 = vmatprep.subr.mxu0 0.0
        %555 = vmatpush1.msra.mxu0 %v540
        %556 = vmatprep.subr.mxu0 0.0
        %557 = vmatpush1.msra.mxu0 %v541
        %558 = vmatprep.subr.mxu0 0.0
        %559 = vmatpush1.msra.mxu0 %v542
        %560 = vmatprep.subr.mxu0 0.0
        %561 = vmatpush1.msra.mxu0 %v543
        %562 = vmatprep.subr.mxu0 0.0
        %563 = vmatpush1.msra.mxu0 0.0
        %564 = vmatprep.subr.mxu0 0.0
        %565 = vmatpush1.msra.mxu0 0.0
        %566 = vmatprep.subr.mxu0 0.0
        %567 = vmatpush1.msra.mxu0 0.0
        %568 = vmatprep.subr.mxu0 0.0
        %569 = vmatpush1.msra.mxu0 0.0
        %570 = vmatprep.subr.mxu0 0.0
        %571 = vmatpush1.msra.mxu0 0.0
        %572 = vmatprep.subr.mxu0 0.0
        %573 = vmatpush1.msra.mxu0 0.0
        %574 = vmatprep.subr.mxu0 0.0
        %575 = vmatpush1.msra.mxu0 0.0
        %576 = vmatprep.subr.mxu0 0.0
        %577 = vmatpush1.msra.mxu0 0.0
        %578 = vmatprep.subr.mxu0 0.0
        %579 = vmatpush1.msra.mxu0 0.0
        %580 = vmatprep.subr.mxu0 0.0
        %581 = vmatpush1.msra.mxu0 0.0
        %582 = vmatprep.subr.mxu0 0.0
        %583 = vmatpush1.msra.mxu0 0.0
        %584 = vmatprep.subr.mxu0 0.0
        %585 = vmatpush1.msra.mxu0 0.0
        %586 = vmatprep.subr.mxu0 0.0
        %587 = vmatpush1.msra.mxu0 0.0
        %588 = vmatprep.subr.mxu0 0.0
        %589 = vmatpush1.msra.mxu0 0.0
        %590 = vmatprep.subr.mxu0 0.0
        %591 = vmatpush1.msra.mxu0 0.0
        %592 = vmatprep.subr.mxu0 0.0
        %593 = vmatpush1.msra.mxu0 0.0
        %594 = vmatprep.subr.mxu0 0.0
        %595 = vmatpush1.msra.mxu0 0.0
        %596 = vmatprep.subr.mxu0 0.0
        %597 = vmatpush1.msra.mxu0 0.0
        %598 = vmatprep.subr.mxu0 0.0
        %599 = vmatpush1.msra.mxu0 0.0
        %600 = vmatprep.subr.mxu0 0.0
        %601 = vmatpush1.msra.mxu0 0.0
        %602 = vmatprep.subr.mxu0 0.0
        %603 = vmatpush1.msra.mxu0 0.0
        %604 = vmatprep.subr.mxu0 0.0
        %605 = vmatpush1.msra.mxu0 0.0
        %606 = vmatprep.subr.mxu0 0.0
        %607 = vmatpush1.msra.mxu0 0.0
        %608 = vmatprep.subr.mxu0 0.0
        %609 = vmatpush1.msra.mxu0 0.0
        %610 = vmatprep.subr.mxu0 0.0
        %611 = vmatpush1.msra.mxu0 0.0
        %612 = vmatprep.subr.mxu0 0.0
        %613 = vmatpush1.msra.mxu0 0.0
        %614 = vmatprep.subr.mxu0 0.0
        %615 = vmatpush1.msra.mxu0 0.0
        %616 = vmatprep.subr.mxu0 0.0
        %617 = vmatpush1.msra.mxu0 0.0
        %618 = vmatprep.mubr.f32.mxu0 0.0
        %619 = vmatmul.mubr.f32.gmra.mrb[0].mxu0 %v552
        %v620 = vpop.f32.mrb[0].mxu0
        %v621 = vadd.f32 %v549, %v620
        %v622 = vpop.f32.mrb[0].mxu0
        %623 = vdwg.mxu0
        %625 = vrot.lane.b32.xlu0 %v621, 96
        %v626 = vpop.permute.xlu0 %625
        %v627 = vsel %vm376, %v621, 0
        %v629 = vsel %vm376, %v626, 0
        %631 = vmatprep.subr.mxu0 0.0
        %632 = vmatpush1.xpose.msra.mxu0 %v629
        %633 = vmatprep.subr.mxu0 0.0
        %634 = vmatpush1.xpose.msra.mxu0 0.0
        %635 = vmatprep.subr.mxu0 0.0
        %636 = vmatpush1.xpose.msra.mxu0 0.0
        %637 = vmatprep.subr.mxu0 0.0
        %638 = vmatpush1.xpose.msra.mxu0 0.0
        %639 = vmatprep.subr.mxu0 0.0
        %640 = vmatpush1.xpose.msra.mxu0 0.0
        %641 = vmatprep.subr.mxu0 0.0
        %642 = vmatpush1.xpose.msra.mxu0 0.0
        %643 = vmatprep.subr.mxu0 0.0
        %644 = vmatpush1.xpose.msra.mxu0 0.0
        %645 = vmatprep.subr.mxu0 0.0
        %646 = vmatpush1.xpose.msra.mxu0 0.0
        %647 = vmatprep.subr.mxu0 0.0
        %648 = vmatpush1.xpose.msra.mxu0 0.0
        %649 = vmatprep.subr.mxu0 0.0
        %650 = vmatpush1.xpose.msra.mxu0 0.0
        %651 = vmatprep.subr.mxu0 0.0
        %652 = vmatpush1.xpose.msra.mxu0 0.0
        %653 = vmatprep.subr.mxu0 0.0
        %654 = vmatpush1.xpose.msra.mxu0 0.0
        %655 = vmatprep.subr.mxu0 0.0
        %656 = vmatpush1.xpose.msra.mxu0 0.0
        %657 = vmatprep.subr.mxu0 0.0
        %658 = vmatpush1.xpose.msra.mxu0 0.0
        %659 = vmatprep.subr.mxu0 0.0
        %660 = vmatpush1.xpose.msra.mxu0 0.0
        %661 = vmatprep.subr.mxu0 0.0
        %662 = vmatpush1.xpose.msra.mxu0 0.0
        %663 = vmatprep.subr.mxu0 0.0
        %664 = vmatpush1.xpose.msra.mxu0 0.0
        %665 = vmatprep.subr.mxu0 0.0
        %666 = vmatpush1.xpose.msra.mxu0 0.0
        %667 = vmatprep.subr.mxu0 0.0
        %668 = vmatpush1.xpose.msra.mxu0 0.0
        %669 = vmatprep.subr.mxu0 0.0
        %670 = vmatpush1.xpose.msra.mxu0 0.0
        %671 = vmatprep.subr.mxu0 0.0
        %672 = vmatpush1.xpose.msra.mxu0 0.0
        %673 = vmatprep.subr.mxu0 0.0
        %674 = vmatpush1.xpose.msra.mxu0 0.0
        %675 = vmatprep.subr.mxu0 0.0
        %676 = vmatpush1.xpose.msra.mxu0 0.0
        %677 = vmatprep.subr.mxu0 0.0
        %678 = vmatpush1.xpose.msra.mxu0 0.0
        %679 = vmatprep.subr.mxu0 0.0
        %680 = vmatpush1.xpose.msra.mxu0 0.0
        %681 = vmatprep.subr.mxu0 0.0
        %682 = vmatpush1.xpose.msra.mxu0 0.0
        %683 = vmatprep.subr.mxu0 0.0
        %684 = vmatpush1.xpose.msra.mxu0 0.0
        %685 = vmatprep.subr.mxu0 0.0
        %686 = vmatpush1.xpose.msra.mxu0 0.0
        %687 = vmatprep.subr.mxu0 0.0
        %688 = vmatpush1.xpose.msra.mxu0 0.0
        %689 = vmatprep.subr.mxu0 0.0
        %690 = vmatpush1.xpose.msra.mxu0 0.0
        %691 = vmatprep.subr.mxu0 0.0
        %692 = vmatpush1.xpose.msra.mxu0 0.0
        %693 = vmatprep.subr.mxu0 0.0
        %694 = vmatpush1.xpose.msra.mxu0 0.0
        %695 = vmatprep.mubr.f32.mxu0 0.0
        %696 = vmatmul.mubr.f32.gmra.mrb[0].mxu0 %v627
        %v697 = vpop.f32.mrb[0].mxu0
        %v698 = vadd.f32 0.0, %v697
        %v699 = vpop.f32.mrb[0].mxu0
        %700 = vdwg.mxu0
        %v701 = vmul.f32 %v698, 0.17677669
        %v702 = vsel %vm452, %v701, -inf
        %703 = vmax.xlane.f32.xlu0 %v702
        %v704 = vpop.xlane.xlu0 %703
        %v705 = vsub.f32 %v701, %v704
        %v706 = vmul.f32 %v705, 1.442695
        %v707 = vpow.pop %v706
        %v708 = vsel %vm452, %v707, 0.0
        %709 = vadd.xlane.f32.xlu0 %v708
        %v710 = vpop.xlane.xlu0 %709
        %v711 = vrcp.pop %v710
        %v712 = vmul.f32 %v707, %v711
        %713 = vrot.lane.b32.xlu0 %v621, 64
        %v714 = vpop.permute.xlu0 %713
        %v717 = vsel %vm452, %v712, 0
        %719 = vmatprep.subr.mxu0 0.0
        %720 = vmatpush1.msra.mxu0 %v714
        %721 = vmatprep.subr.mxu0 0.0
        %722 = vmatpush1.msra.mxu0 0.0
        %723 = vmatprep.subr.mxu0 0.0
        %724 = vmatpush1.msra.mxu0 0.0
        %725 = vmatprep.subr.mxu0 0.0
        %726 = vmatpush1.msra.mxu0 0.0
        %727 = vmatprep.subr.mxu0 0.0
        %728 = vmatpush1.msra.mxu0 0.0
        %729 = vmatprep.subr.mxu0 0.0
        %730 = vmatpush1.msra.mxu0 0.0
        %731 = vmatprep.subr.mxu0 0.0
        %732 = vmatpush1.msra.mxu0 0.0
        %733 = vmatprep.subr.mxu0 0.0
        %734 = vmatpush1.msra.mxu0 0.0
        %735 = vmatprep.subr.mxu0 0.0
        %736 = vmatpush1.msra.mxu0 0.0
        %737 = vmatprep.subr.mxu0 0.0
        %738 = vmatpush1.msra.mxu0 0.0
        %739 = vmatprep.subr.mxu0 0.0
        %740 = vmatpush1.msra.mxu0 0.0
        %741 = vmatprep.subr.mxu0 0.0
        %742 = vmatpush1.msra.mxu0 0.0
        %743 = vmatprep.subr.mxu0 0.0
        %744 = vmatpush1.msra.mxu0 0.0
        %745 = vmatprep.subr.mxu0 0.0
        %746 = vmatpush1.msra.mxu0 0.0
        %747 = vmatprep.subr.mxu0 0.0
        %748 = vmatpush1.msra.mxu0 0.0
        %749 = vmatprep.subr.mxu0 0.0
        %750 = vmatpush1.msra.mxu0 0.0
        %751 = vmatprep.subr.mxu0 0.0
        %752 = vmatpush1.msra.mxu0 0.0
        %753 = vmatprep.subr.mxu0 0.0
        %754 = vmatpush1.msra.mxu0 0.0
        %755 = vmatprep.subr.mxu0 0.0
        %756 = vmatpush1.msra.mxu0 0.0
        %757 = vmatprep.subr.mxu0 0.0
        %758 = vmatpush1.msra.mxu0 0.0
        %759 = vmatprep.subr.mxu0 0.0
        %760 = vmatpush1.msra.mxu0 0.0
        %761 = vmatprep.subr.mxu0 0.0
        %762 = vmatpush1.msra.mxu0 0.0
        %763 = vmatprep.subr.mxu0 0.0
        %764 = vmatpush1.msra.mxu0 0.0
        %765 = vmatprep.subr.mxu0 0.0
        %766 = vmatpush1.msra.mxu0 0.0
        %767 = vmatprep.subr.mxu0 0.0
        %768 = vmatpush1.msra.mxu0 0.0
        %769 = vmatprep.subr.mxu0 0.0
        %770 = vmatpush1.msra.mxu0 0.0
        %771 = vmatprep.subr.mxu0 0.0
        %772 = vmatpush1.msra.mxu0 0.0
        %773 = vmatprep.subr.mxu0 0.0
        %774 = vmatpush1.msra.mxu0 0.0
        %775 = vmatprep.subr.mxu0 0.0
        %776 = vmatpush1.msra.mxu0 0.0
        %777 = vmatprep.subr.mxu0 0.0
        %778 = vmatpush1.msra.mxu0 0.0
        %779 = vmatprep.subr.mxu0 0.0
        %780 = vmatpush1.msra.mxu0 0.0
        %781 = vmatprep.subr.mxu0 0.0
        %782 = vmatpush1.msra.mxu0 0.0
        %783 = vmatprep.mubr.f32.mxu0 0.0
        %784 = vmatmul.mubr.f32.gmra.mrb[0].mxu0 %v717
        %v785 = vpop.f32.mrb[0].mxu0
        %v786 = vadd.f32 0.0, %v785
        %v787 = vpop.f32.mrb[0].mxu0
        %788 = vdwg.mxu0
        %v789 = vld [vmem:[%s5] sm:$0xff]
        %v790 = vld [vmem:[%s5 + $0x8] sm:$0xff]
        %v791 = vld [vmem:[%s5 + $0x10] sm:$0xff]
        %v792 = vld [vmem:[%s5 + $0x18] sm:$0xff]
        %v793 = vld [vmem:[%s6] sm:$0x1]
        %v795 = vlaneseq
        %v796 = vshrl.u32 %v795, 7
        %v797 = vsub.s32 0, %v796
        %v798 = vrot.slane %v793, %v797
        %v801 = vsel %vm376, %v786, 0
        %803 = vmatprep.subr.mxu0 0.0
        %804 = vmatpush1.msra.mxu0 %v789
        %805 = vmatprep.subr.mxu0 0.0
        %806 = vmatpush1.msra.mxu0 %v790
        %807 = vmatprep.subr.mxu0 0.0
        %808 = vmatpush1.msra.mxu0 %v791
        %809 = vmatprep.subr.mxu0 0.0
        %810 = vmatpush1.msra.mxu0 %v792
        %811 = vmatprep.subr.mxu0 0.0
        %812 = vmatpush1.msra.mxu0 0.0
        %813 = vmatprep.subr.mxu0 0.0
        %814 = vmatpush1.msra.mxu0 0.0
        %815 = vmatprep.subr.mxu0 0.0
        %816 = vmatpush1.msra.mxu0 0.0
        %817 = vmatprep.subr.mxu0 0.0
        %818 = vmatpush1.msra.mxu0 0.0
        %819 = vmatprep.subr.mxu0 0.0
        %820 = vmatpush1.msra.mxu0 0.0
        %821 = vmatprep.subr.mxu0 0.0
        %822 = vmatpush1.msra.mxu0 0.0
        %823 = vmatprep.subr.mxu0 0.0
        %824 = vmatpush1.msra.mxu0 0.0
        %825 = vmatprep.subr.mxu0 0.0
        %826 = vmatpush1.msra.mxu0 0.0
        %827 = vmatprep.subr.mxu0 0.0
        %828 = vmatpush1.msra.mxu0 0.0
        %829 = vmatprep.subr.mxu0 0.0
        %830 = vmatpush1.msra.mxu0 0.0
        %831 = vmatprep.subr.mxu0 0.0
        %832 = vmatpush1.msra.mxu0 0.0
        %833 = vmatprep.subr.mxu0 0.0
        %834 = vmatpush1.msra.mxu0 0.0
        %835 = vmatprep.subr.mxu0 0.0
        %836 = vmatpush1.msra.mxu0 0.0
        %837 = vmatprep.subr.mxu0 0.0
        %838 = vmatpush1.msra.mxu0 0.0
        %839 = vmatprep.subr.mxu0 0.0
        %840 = vmatpush1.msra.mxu0 0.0
        %841 = vmatprep.subr.mxu0 0.0
        %842 = vmatpush1.msra.mxu0 0.0
        %843 = vmatprep.subr.mxu0 0.0
        %844 = vmatpush1.msra.mxu0 0.0
        %845 = vmatprep.subr.mxu0 0.0
        %846 = vmatpush1.msra.mxu0 0.0
        %847 = vmatprep.subr.mxu0 0.0
        %848 = vmatpush1.msra.mxu0 0.0
        %849 = vmatprep.subr.mxu0 0.0
        %850 = vmatpush1.msra.mxu0 0.0
        %851 = vmatprep.subr.mxu0 0.0
        %852 = vmatpush1.msra.mxu0 0.0
        %853 = vmatprep.subr.mxu0 0.0
        %854 = vmatpush1.msra.mxu0 0.0
        %855 = vmatprep.subr.mxu0 0.0
        %856 = vmatpush1.msra.mxu0 0.0
        %857 = vmatprep.subr.mxu0 0.0
        %858 = vmatpush1.msra.mxu0 0.0
        %859 = vmatprep.subr.mxu0 0.0
        %860 = vmatpush1.msra.mxu0 0.0
        %861 = vmatprep.subr.mxu0 0.0
        %862 = vmatpush1.msra.mxu0 0.0
        %863 = vmatprep.subr.mxu0 0.0
        %864 = vmatpush1.msra.mxu0 0.0
        %865 = vmatprep.subr.mxu0 0.0
        %866 = vmatpush1.msra.mxu0 0.0
        %867 = vmatprep.mubr.f32.mxu0 0.0
        %868 = vmatmul.mubr.f32.gmra.mrb[0].mxu0 %v801
        %v869 = vpop.f32.mrb[0].mxu0
        %v870 = vadd.f32 %v798, %v869
        %v871 = vpop.f32.mrb[0].mxu0
        %872 = vdwg.mxu0
        %873 = vst.msk [vmem:[%s284] sm:$0xff] %vm452, %v870
        %s874 = sand.u32 %s182, 1
        %s875 = scalar_lea.sflag [#allocation4], %s874
        %s876 = sand.u32 %s182, 1
        %s877 = smul.addr %s876, 8
        %s878 = scalar_lea.vmem [#allocation5], %s877
        // Predicated region
        $region53: #{tpu_custom_call.1} parent=47 // pred_check
          %p879 = pneg %p192
        $region54: #{tpu_custom_call.1} parent=47 // pred_check_branch
          %881 = sbr.rel (%p879) target = $region56
        $region55: #{tpu_custom_call.1} parent=47 // pred_region
          %s883 = ssub.s32 128, 128
          %884 = vsyncadd %s875, %s883
          %s885 = smul.addr %s22, 128
          %s886 = scalar_lea.hbm %s7, %s885
          %s888 = sshll.u32 %s878, 4
          %s889 = int_to_ptr.vmem [resolvable:$true] %s888
          %891 = dma.vmem_to_hbm [thread:$0]  %s889, 128, %s886, %s875
        $region56: #{tpu_custom_call.1} parent=47 // pred_fallthru
          _
      $region48: #{tpu_custom_call.1} parent=5 // pred_fallthru
        _
      %p892 = scmp.le.s32.totalorder 2, %s17
      // Predicated region
      $region57: #{tpu_custom_call.1} parent=5 // pred_check
        %p893 = pneg %p892
      $region58: #{tpu_custom_call.1} parent=5 // pred_check_branch
        %895 = sbr.rel (%p893) target = $region60
      $region59: #{tpu_custom_call.1} parent=5 // pred_region
        %s896 = ssub.s32 %s17, 2
        // Predicated region
        $region61: #{tpu_custom_call.1} parent=59 // pred_check
          %p897 = pneg %p198
        $region62: #{tpu_custom_call.1} parent=59 // pred_check_branch
          %899 = sbr.rel (%p897) target = $region64
        $region63: #{tpu_custom_call.1} parent=59 // pred_region
          %s900 = sand.u32 %s183, 1
          %s901 = scalar_lea.sflag [#allocation4], %s900
          %s902 = sand.u32 %s183, 1
          %s903 = smul.addr %s902, 8
          %s904 = scalar_lea.vmem [#allocation5], %s903
          %905 = dma.done %s901, 128
        $region64: #{tpu_custom_call.1} parent=59 // pred_fallthru
          _
      $region60: #{tpu_custom_call.1} parent=5 // pred_fallthru
        _
    $region6: #{tpu_custom_call.1} parent=1 // loop_footer
      %s21 = sadd.s32 1, %s17
    $region7: #{tpu_custom_call.1} parent=1 // loop_footer_branch
      %16 = sbr.rel target = $region3
    $region8: #{tpu_custom_call.1} parent=1 // loop_exit
      _
    %906 = vsyncpa [#allocation3], 1
    %s907 = scalar_lea.sflag [#allocation3], 1
    %908 = vsyncpa %s907, 1
    %909 = vsyncpa [#allocation4], 1
    %s910 = scalar_lea.sflag [#allocation4], 1
    %911 = vsyncpa %s910, 1

</llo_original>
